<compile_context>
chip_gen: v7x
topology: tpu7x:2x2x1
jax: 0.10.0
libtpu: 0.0.40
codegen_flags: <defaults>
</compile_context>

<pallas_src>
import functools

import jax
import jax.numpy as jnp
from jax.experimental import pallas as pl
from jax.experimental.pallas import tpu as pltpu


def _round_up(x, m):
    return (x + m - 1) // m * m


def _cdiv(a, b):
    return (a + b - 1) // b


def _pad2d(x, rows, cols):
    return jnp.pad(x, ((0, rows - x.shape[0]), (0, cols - x.shape[1])))


def _gcn_kernel(a_ref, dr_ref, fs_ref, fi_ref, w_ref, b_ref, o_ref, acc_ref, *,
                compute_dtype):
    k = pl.program_id(1)

    @pl.when(k == 0)
    def _():
        acc_ref[...] = jnp.zeros_like(acc_ref)

    # MXU hot loop: raw (narrow-dtype) adjacency tile x pre-scaled features.
    # All normalization work has been moved off this (tm, tk) tile.
    acc_ref[...] += jnp.dot(a_ref[...].astype(compute_dtype), fs_ref[...],
                            preferred_element_type=jnp.float32)

    # Finalize once per row block: f32 row scaling + identity term + projection.
    @pl.when(k == pl.num_programs(1) - 1)
    def _():
        dr = dr_ref[...]                                      # (tm, 1) f32
        af = dr * acc_ref[...] + (dr * dr) * fi_ref[...]      # f32
        o_ref[...] = (jnp.dot(af, w_ref[...],
                              preferred_element_type=jnp.float32)
                      + b_ref[...]).astype(o_ref.dtype)


def gcn_conv_pallas(adjacency, d_inv_sqrt, features, weight, bias,
                    cooccurrence_weight, *, compute_dtype=jnp.bfloat16,
                    a_dtype=jnp.bfloat16, tm=512, tk=2048):
    """Fused GCNConv:  (D^-1/2 (cw*A + I) D^-1/2 @ F) @ W + b, tiled on TPU."""
    n, f_dim = features.shape
    e_dim = weight.shape[1]

    # --- Tile / pad selection: pad to the minimum alignment first, then pick
    # tile sizes that divide it (keeps padded adjacency bytes near-minimal). ---
    row_align = {4: 8, 2: 16, 1: 32}[jnp.dtype(a_dtype).itemsize]
    m_min = _round_up(n, row_align)
    k_min = _round_up(n, 128)

    gm = max(1, _cdiv(m_min, tm))
    if gm == 1 and m_min >= 2 * row_align:
        gm = 2                      # >=2 row blocks -> both TensorCores on v7x
    tm = _round_up(_cdiv(m_min, gm), row_align)
    n_pad_m = tm * gm

    gk = max(1, _cdiv(k_min, tk))
    tk = _round_up(_cdiv(k_min, gk), 128)
    n_pad_k = tk * gk

    f_pad = _round_up(f_dim, 128)   # lane-pad inner dim of the chain
    e_pad = _round_up(e_dim, 128)   # lane-dense output -> unmasked stores

    # --- Wrapper-side prep: fold cw and the column d^{-1/2} into F once. ---
    d_col = d_inv_sqrt.astype(jnp.float32)
    f_scaled = (cooccurrence_weight * d_col[:, None]
                * features.astype(jnp.float32))

    # Padded rows/cols: A padded with zeros, d^{-1/2} and F padded with zeros,
    # so padding contributes nothing; padded output rows are sliced off.
    a_p = _pad2d(adjacency.astype(a_dtype), n_pad_m, n_pad_k)
    dr_p = _pad2d(d_col[:, None], n_pad_m, 1)
    fs_p = _pad2d(f_scaled, n_pad_k, f_pad).astype(compute_dtype)
    fi_p = _pad2d(features.astype(jnp.float32), n_pad_m, f_pad)
    w_p = _pad2d(weight.astype(jnp.float32), f_pad, e_pad)
    b_p = _pad2d(bias.astype(jnp.float32)[None, :], 1, e_pad)

    grid = (gm, gk)
    a_bytes = jnp.dtype(a_dtype).itemsize
    c_bytes = jnp.dtype(compute_dtype).itemsize
    cost = pl.CostEstimate(
        flops=2 * n_pad_m * n_pad_k * f_pad + 2 * n_pad_m * f_pad * e_pad,
        transcendentals=0,
        bytes_accessed=(n_pad_m * n_pad_k * a_bytes
                        + n_pad_k * f_pad * c_bytes
                        + n_pad_m * f_pad * 4
                        + (f_pad * e_pad + e_pad + n_pad_m) * 4
                        + n_pad_m * e_pad * 4),
    )

    kernel = functools.partial(_gcn_kernel, compute_dtype=compute_dtype)

    out = pl.pallas_call(
        kernel,
        out_shape=jax.ShapeDtypeStruct((n_pad_m, e_pad), jnp.float32),
        grid_spec=pltpu.PrefetchScalarGridSpec(
            num_scalar_prefetch=0,
            grid=grid,
            in_specs=[
                pl.BlockSpec((tm, tk), lambda i, k: (i, k)),        # raw A tile
                pl.BlockSpec((tm, 1), lambda i, k: (i, 0)),         # d^-1/2 rows
                pl.BlockSpec((tk, f_pad), lambda i, k: (k, 0)),     # F' (prescaled)
                pl.BlockSpec((tm, f_pad), lambda i, k: (i, 0)),     # F rows (identity)
                pl.BlockSpec((f_pad, e_pad), lambda i, k: (0, 0)),  # W (resident)
                pl.BlockSpec((1, e_pad), lambda i, k: (0, 0)),      # bias
            ],
            out_specs=pl.BlockSpec((tm, e_pad), lambda i, k: (i, 0)),
            scratch_shapes=[pltpu.VMEM((tm, f_pad), jnp.float32)],
        ),
        compiler_params=pltpu.CompilerParams(
            dimension_semantics=("parallel", "arbitrary"),
            vmem_limit_bytes=48 * 1024 * 1024,   # fits v7x 64 MiB; tiles ~7 MiB
        ),
        cost_estimate=cost,
    )(a_p, dr_p, fs_p, fi_p, w_p, b_p)

    return out[:n, :e_dim]


def base_gce_layer_forward(x_idx, features, adjacency, weight, bias,
                           cooccurrence_weight, *, compute_dtype=jnp.bfloat16,
                           a_dtype=jnp.bfloat16):
    """JAX equivalent of a (derived) BaseGCELayer.forward(x), GCNConv path."""
    # Degrees of A_hat = cw*A + I (one cheap O(N^2) streaming read by XLA);
    # all per-element normalization is hoisted off the Pallas hot loop.
    deg = (cooccurrence_weight
           * jnp.sum(adjacency.astype(jnp.float32), axis=1) + 1.0)
    d_inv_sqrt = jax.lax.rsqrt(deg)

    emb = gcn_conv_pallas(adjacency, d_inv_sqrt, features, weight, bias,
                          cooccurrence_weight, compute_dtype=compute_dtype,
                          a_dtype=a_dtype)

    # TODO(synk): fold this gather into the kernel (PrefetchScalarGridSpec on
    # x_idx) when |x| << N to avoid streaming the full adjacency.
    return jnp.take(emb, x_idx, axis=0)


def _reference(x_idx, features, adjacency, weight, bias, cw):
    n = features.shape[0]
    a_hat = cw * adjacency.astype(jnp.float32) + jnp.eye(n, dtype=jnp.float32)
    d_inv_sqrt = 1.0 / jnp.sqrt(jnp.sum(a_hat, axis=1))
    a_norm = a_hat * d_inv_sqrt[:, None] * d_inv_sqrt[None, :]
    af = jnp.dot(a_norm, features, precision=jax.lax.Precision.HIGHEST)
    emb = jnp.dot(af, weight, precision=jax.lax.Precision.HIGHEST) + bias[None, :]
    return jnp.take(emb, x_idx, axis=0)


if __name__ == "__main__":
    key = jax.random.PRNGKey(0)
    k_feat, k_adj, k_w, k_b, k_x = jax.random.split(key, 5)

    # Small shapes consistent with the module.
    num_nodes = 16       # number of graph nodes (fields/items)
    field_dims = 8       # GCNConv in_channels
    embedding_dim = 32   # GCNConv out_channels
    cooccurrence_weight = 0.5

    features = jax.random.normal(k_feat, (num_nodes, field_dims), jnp.float32)
    adj_rand = jax.random.uniform(k_adj, (num_nodes, num_nodes), jnp.float32)
    adjacency = (0.5 * (adj_rand + adj_rand.T) > 0.5).astype(jnp.float32)
    adjacency = adjacency * (1.0 - jnp.eye(num_nodes, dtype=jnp.float32))

    weight = jax.random.normal(k_w, (field_dims, embedding_dim),
                               jnp.float32) * 0.1
    bias = jax.random.normal(k_b, (embedding_dim,), jnp.float32) * 0.1

    x = jax.random.randint(k_x, (2, 4), 0, num_nodes, jnp.int32)

    ref = _reference(x, features, adjacency, weight, bias, cooccurrence_weight)

    # 1) f32 everywhere — strict check.
    out_f32 = base_gce_layer_forward(x, features, adjacency, weight, bias,
                                     cooccurrence_weight,
                                     compute_dtype=jnp.float32,
                                     a_dtype=jnp.float32)
    out_f32 = jax.block_until_ready(out_f32)
    assert out_f32.shape == (2, 4, embedding_dim)
    assert jnp.allclose(out_f32, ref, atol=1e-4, rtol=1e-4)

    # 2) Default fast path: bf16-streamed A + bf16 F' with f32 accumulation.
    out_bf16 = base_gce_layer_forward(x, features, adjacency, weight, bias,
                                      cooccurrence_weight)
    out_bf16 = jax.block_until_ready(out_bf16)
    assert jnp.allclose(out_bf16, ref, atol=5e-2, rtol=5e-2)

    # 3) int8-streamed binary adjacency (4x less HBM traffic on the N^2 term).
    out_i8 = base_gce_layer_forward(x, features, adjacency, weight, bias,
                                    cooccurrence_weight, a_dtype=jnp.int8)
    out_i8 = jax.block_until_ready(out_i8)
    assert jnp.allclose(out_i8, ref, atol=5e-2, rtol=5e-2)

    # 4) Larger graph exercising multi-row-block grid and the padding-fit logic.
    num_nodes2 = 640
    k_feat2, k_adj2 = jax.random.split(jax.random.PRNGKey(1), 2)
    features2 = jax.random.normal(k_feat2, (num_nodes2, field_dims),
                                  jnp.float32)
    adj2 = (jax.random.uniform(k_adj2, (num_nodes2, num_nodes2)) > 0.7)
    adj2 = jnp.triu(adj2.astype(jnp.float32), 1)
    adj2 = adj2 + adj2.T
    x2 = jnp.arange(num_nodes2, dtype=jnp.int32)

    ref2 = _reference(x2, features2, adj2, weight, bias, cooccurrence_weight)

    out2_f32 = base_gce_layer_forward(x2, features2, adj2, weight, bias,
                                      cooccurrence_weight,
                                      compute_dtype=jnp.float32,
                                      a_dtype=jnp.float32)
    out2_f32 = jax.block_until_ready(out2_f32)
    assert jnp.allclose(out2_f32, ref2, atol=1e-3, rtol=1e-3)

    out2_fast = base_gce_layer_forward(x2, features2, adj2, weight, bias,
                                       cooccurrence_weight, a_dtype=jnp.int8)
    out2_fast = jax.block_until_ready(out2_fast)
    assert jnp.allclose(out2_fast, ref2, atol=5e-2, rtol=5e-2)

    print("KERNEL_OK")
</pallas_src>

<mosaic_0001>
module attributes {stable_mosaic.version = 11 : i64} {
  func.func @_gcn_kernel(%arg0: i32, %arg1: i32, %arg2: memref<8x128xf32, #tpu.memory_space<vmem>>, %arg3: memref<8x1xf32, #tpu.memory_space<vmem>>, %arg4: memref<128x128xf32, #tpu.memory_space<vmem>>, %arg5: memref<8x128xf32, #tpu.memory_space<vmem>>, %arg6: memref<128x128xf32, #tpu.memory_space<vmem>>, %arg7: memref<1x128xf32, #tpu.memory_space<vmem>>, %arg8: memref<8x128xf32, #tpu.memory_space<vmem>>, %arg9: memref<8x128xf32, #tpu.memory_space<vmem>>) attributes {dimension_semantics = [#tpu.dimension_semantics<parallel>, #tpu.dimension_semantics<arbitrary>], iteration_bounds = array<i64: 2, 1>, scalar_prefetch = 0 : i64, scratch_operands = 1 : i64, tpu.core_type = #tpu.core_type<tc>, window_params = [{transform_indices = @transform_0, window_bounds = array<i64: 8, 128>}, {transform_indices = @transform_1, window_bounds = array<i64: 8, 1>}, {transform_indices = @transform_2, window_bounds = array<i64: 128, 128>}, {transform_indices = @transform_3, window_bounds = array<i64: 8, 128>}, {pipeline_mode = #tpu.pipeline_mode<synchronous>, transform_indices = @transform_4, window_bounds = array<i64: 128, 128>}, {pipeline_mode = #tpu.pipeline_mode<synchronous>, transform_indices = @transform_5, window_bounds = array<i64: 1, 128>}, {transform_indices = @transform_6, window_bounds = array<i64: 8, 128>}]} {
    %c0_i32 = arith.constant 0 : i32
    %0 = arith.cmpi eq, %arg1, %c0_i32 : i32
    %1 = arith.extui %0 : i1 to i32
    %c0_i32_0 = arith.constant 0 : i32
    %2 = arith.cmpi ne, %1, %c0_i32_0 : i32
    scf.if %2 {
      %cst_10 = arith.constant 0.000000e+00 : f32
      %12 = vector.broadcast %cst_10 : f32 to vector<8x128xf32>
      %c0_11 = arith.constant 0 : index
      %c0_12 = arith.constant 0 : index
      %13 = vector.load %arg9[%c0_11, %c0_12] : memref<8x128xf32, #tpu.memory_space<vmem>>, vector<8x128xf32>
      tpu.vector_store %arg9[%c0_11, %c0_12], %12 {strides = array<i32>} : memref<8x128xf32, #tpu.memory_space<vmem>>, vector<8x128xf32>,
    } else {
    }
    %c0 = arith.constant 0 : index
    %c0_1 = arith.constant 0 : index
    %3 = vector.load %arg9[%c0, %c0_1] : memref<8x128xf32, #tpu.memory_space<vmem>>, vector<8x128xf32>
    %c0_2 = arith.constant 0 : index
    %c0_3 = arith.constant 0 : index
    %4 = vector.load %arg2[%c0_2, %c0_3] : memref<8x128xf32, #tpu.memory_space<vmem>>, vector<8x128xf32>
    %c0_4 = arith.constant 0 : index
    %c0_5 = arith.constant 0 : index
    %5 = vector.load %arg4[%c0_4, %c0_5] : memref<128x128xf32, #tpu.memory_space<vmem>>, vector<128x128xf32>
    %cst = arith.constant dense<0.000000e+00> : vector<8x128xf32>
    %6 = tpu.matmul %4, %5, %cst {dimension_numbers = #tpu.dot_dimension_numbers<[1], [0], [0], [1], [0, 0, 1, 1], [], []>} : vector<8x128xf32>, vector<128x128xf32>, vector<8x128xf32> -> vector<8x128xf32>
    %7 = arith.addf %3, %6 : vector<8x128xf32>
    %c0_6 = arith.constant 0 : index
    %c0_7 = arith.constant 0 : index
    %8 = vector.load %arg9[%c0_6, %c0_7] : memref<8x128xf32, #tpu.memory_space<vmem>>, vector<8x128xf32>
    tpu.vector_store %arg9[%c0_6, %c0_7], %7 {strides = array<i32>} : memref<8x128xf32, #tpu.memory_space<vmem>>, vector<8x128xf32>,
    %c0_i32_8 = arith.constant 0 : i32
    %9 = arith.cmpi eq, %arg1, %c0_i32_8 : i32
    %10 = arith.extui %9 : i1 to i32
    %c0_i32_9 = arith.constant 0 : i32
    %11 = arith.cmpi ne, %10, %c0_i32_9 : i32
    scf.if %11 {
      %c0_10 = arith.constant 0 : index
      %c0_11 = arith.constant 0 : index
      %12 = vector.load %arg3[%c0_10, %c0_11] : memref<8x1xf32, #tpu.memory_space<vmem>>, vector<8x1xf32>
      %c0_12 = arith.constant 0 : index
      %c0_13 = arith.constant 0 : index
      %13 = vector.load %arg9[%c0_12, %c0_13] : memref<8x128xf32, #tpu.memory_space<vmem>>, vector<8x128xf32>
      %14 = vector.broadcast %12 : vector<8x1xf32> to vector<8x128xf32>
      %15 = arith.mulf %14, %13 : vector<8x128xf32>
      %16 = arith.mulf %12, %12 : vector<8x1xf32>
      %c0_14 = arith.constant 0 : index
      %c0_15 = arith.constant 0 : index
      %17 = vector.load %arg5[%c0_14, %c0_15] : memref<8x128xf32, #tpu.memory_space<vmem>>, vector<8x128xf32>
      %18 = vector.broadcast %16 : vector<8x1xf32> to vector<8x128xf32>
      %19 = arith.mulf %18, %17 : vector<8x128xf32>
      %20 = arith.addf %15, %19 : vector<8x128xf32>
      %c0_16 = arith.constant 0 : index
      %c0_17 = arith.constant 0 : index
      %21 = vector.load %arg6[%c0_16, %c0_17] : memref<128x128xf32, #tpu.memory_space<vmem>>, vector<128x128xf32>
      %cst_18 = arith.constant dense<0.000000e+00> : vector<8x128xf32>
      %22 = tpu.matmul %20, %21, %cst_18 {dimension_numbers = #tpu.dot_dimension_numbers<[1], [0], [0], [1], [0, 0, 1, 1], [], []>} : vector<8x128xf32>, vector<128x128xf32>, vector<8x128xf32> -> vector<8x128xf32>
      %c0_19 = arith.constant 0 : index
      %c0_20 = arith.constant 0 : index
      %23 = vector.load %arg7[%c0_19, %c0_20] : memref<1x128xf32, #tpu.memory_space<vmem>>, vector<1x128xf32>
      %24 = vector.broadcast %23 : vector<1x128xf32> to vector<8x128xf32>
      %25 = arith.addf %22, %24 : vector<8x128xf32>
      %c0_21 = arith.constant 0 : index
      %c0_22 = arith.constant 0 : index
      %26 = vector.load %arg8[%c0_21, %c0_22] : memref<8x128xf32, #tpu.memory_space<vmem>>, vector<8x128xf32>
      tpu.vector_store %arg8[%c0_21, %c0_22], %25 {strides = array<i32>} : memref<8x128xf32, #tpu.memory_space<vmem>>, vector<8x128xf32>,
    } else {
    }
    return
  }
  func.func @transform_0(%arg0: i32, %arg1: i32) -> (i32, i32) {
    %c0_i32 = arith.constant 0 : i32
    return %arg0, %arg1 : i32, i32
  }
  func.func @transform_1(%arg0: i32, %arg1: i32) -> (i32, i32) {
    %c0_i32 = arith.constant 0 : i32
    %c0_i32_0 = arith.constant 0 : i32
    return %arg0, %c0_i32 : i32, i32
  }
  func.func @transform_2(%arg0: i32, %arg1: i32) -> (i32, i32) {
    %c0_i32 = arith.constant 0 : i32
    %c0_i32_0 = arith.constant 0 : i32
    return %arg1, %c0_i32 : i32, i32
  }
  func.func @transform_3(%arg0: i32, %arg1: i32) -> (i32, i32) {
    %c0_i32 = arith.constant 0 : i32
    %c0_i32_0 = arith.constant 0 : i32
    return %arg0, %c0_i32 : i32, i32
  }
  func.func @transform_4(%arg0: i32, %arg1: i32) -> (i32, i32) {
    %c0_i32 = arith.constant 0 : i32
    %c0_i32_0 = arith.constant 0 : i32
    %c0_i32_1 = arith.constant 0 : i32
    return %c0_i32, %c0_i32_0 : i32, i32
  }
  func.func @transform_5(%arg0: i32, %arg1: i32) -> (i32, i32) {
    %c0_i32 = arith.constant 0 : i32
    %c0_i32_0 = arith.constant 0 : i32
    %c0_i32_1 = arith.constant 0 : i32
    return %c0_i32, %c0_i32_0 : i32, i32
  }
  func.func @transform_6(%arg0: i32, %arg1: i32) -> (i32, i32) {
    %c0_i32 = arith.constant 0 : i32
    %c0_i32_0 = arith.constant 0 : i32
    return %arg0, %c0_i32 : i32, i32
  }
}

</mosaic_0001>

<llo_original>
// kernel: tpu_custom_call.1
$region0: #{tpu_custom_call.1}
  #allocation0 [shape = 'u32[]', space=smem, size = 0x4, offset = 0x4, fixed_abs, tag = 'smem constant byte address 0x4 - core index']
  #allocation1 [shape = 'u32[144,128]{1,0:T(1,128)}', space=vmem, size = 0x12000, scoped, tag = 'internal scratch']
  #allocation2 [shape = 'f32[8,128]{1,0:T(8,128)}', space=vmem, size = 0x1000, scoped, tag = 'scratch operand']
  %s0 = inlined_call_operand.vmem [shape: f32[16,128], index: 0, kind: input, shape index: {}]
  %s1 = inlined_call_operand.vmem [shape: f32[16,1], index: 1, kind: input, shape index: {}]
  %s2 = inlined_call_operand.hbm [shape: f32[128,128], index: 2, kind: input, shape index: {}]
  %s3 = inlined_call_operand.hbm [shape: f32[16,128], index: 3, kind: input, shape index: {}]
  %s4 = inlined_call_operand.hbm [shape: f32[128,128], index: 4, kind: input, shape index: {}]
  %s5 = inlined_call_operand.vmem [shape: f32[1,128], index: 5, kind: input, shape index: {}]
  %s6 = inlined_call_operand.hbm [shape: f32[16,128], index: 6, kind: output, shape index: {}]
  %s7 = sld [smem:[#allocation0]]
  $region77: #{tpu_custom_call.1} parent=0
    _
  %s9 = ssub.s32 1, %s7
  %s10 = scalar_select 0, %s9, %s7
  $region1: #{tpu_custom_call.1} parent=0
    #allocation3 [shape = 'u8[65536]{0}', space=vmem, size = 0x10000, scoped, tag = 'input window, operand 2, single buffered']
    #allocation4 [shape = 's32[2]{0}', space=sflag, size = 0x8, scoped, tag = 'scoped memory for tpu_custom_call.1']
    #allocation5 [shape = 's32[2]{0}', space=sflag, size = 0x8, scoped, tag = 'scoped memory for tpu_custom_call.1']
    #allocation6 [shape = 'u8[8192]{0}', space=vmem, size = 0x2000, scoped, tag = 'input window, operand 3']
    #allocation7 [shape = 's32[2]{0}', space=sflag, size = 0x8, scoped, tag = 'scoped memory for tpu_custom_call.1']
    #allocation8 [shape = 'u8[65536]{0}', space=vmem, size = 0x10000, scoped, tag = 'input window, operand 4, single buffered']
    #allocation9 [shape = 'u8[8192]{0}', space=vmem, size = 0x2000, scoped, tag = 'output window, operand 0']
    %11 = vsyncpa [#allocation4], 0
    %12 = vsyncpa [#allocation7], 0
    %s13 = scalar_lea.sflag [#allocation7], 1
    %14 = vsyncpa %s13, 0
    %15 = vsyncpa [#allocation5], 0
    %s16 = scalar_lea.sflag [#allocation5], 1
    %17 = vsyncpa %s16, 0
    loop: start=0, step=1, limit=4
    $region2: #{tpu_custom_call.1} parent=1 // loop_pre_header
      _
    $region3: #{tpu_custom_call.1} parent=1 // loop_header
      %s19 = sphi 0, %s23
      %p20 = scmp.ge.s32.totalorder %s19, 4
      %s26 = sphi 0, %s38
      %s27 = sphi 0, %s34
      %s28 = sphi 0, %s26
      %s29 = sphi 0, %s27
      %s30 = sphi 0, %s28
      %s31 = sphi 0, %s29
      %s43 = sphi 0, %s45
      %s46 = sphi 0, %s43
      %s47 = sphi 0, %s46
      %s63 = sphi 0, %s47
      %s69 = sphi 0, %s71
      %s72 = sphi 0, %s69
      %s73 = sphi 0, %s72
      %s89 = sphi 0, %s73
      %s95 = sphi 0, %s97
      %s98 = sphi 0, %s95
      %s99 = sphi 0, %s98
      %s115 = sphi 0, %s99
      %s121 = sphi 0, %s123
      %s124 = sphi 0, %s121
      %s125 = sphi 0, %s124
      %s141 = sphi 0, %s125
      %s145 = sphi 0, %s145
      %s147 = sphi 0, %s145
      %s148 = sphi 0, %s147
      %s162 = sphi 0, %s148
      %s166 = sphi 0, %s166
      %s168 = sphi 0, %s166
      %s169 = sphi 0, %s168
      %s183 = sphi 0, %s169
      %s189 = sphi 0, %s191
      %s192 = sphi 0, %s189
      %s193 = sphi 0, %s192
      %s209 = sphi 0, %s193
    $region4: #{tpu_custom_call.1} parent=1 // loop_header_branch
      %22 = sbr.rel (%p20) target = $region8
    $region5: #{tpu_custom_call.1} parent=1 // loop_body
      %s24 = ssub.s32 %s19, 1
      %s25 = ssub.s32 %s19, 2
      %s32 = sadd.s32 1, %s27
      %p33 = scmp.ge.s32.totalorder %s32, 1
      %s34 = scalar_select %p33, 0, %s32
      %s35 = sadd.s32 1, %s26
      %s36 = scalar_select %p33, %s35, %s26
      %p37 = scmp.ge.s32.totalorder %s36, 2
      %s38 = scalar_select %p37, 0, %s36
      %s39 = ssub.s32 %s26, %s38
      %s40 = ssub.s32 %s27, %s34
      %s41 = sor.u32 %s39, %s40
      %p42 = scmp.eq.s32.totalorder %s41, 0
      %s44 = sadd.s32 %s43, 1
      %s45 = scalar_select %p42, %s43, %s44
      %p48 = pneg %p42
      %p49 = scmp.eq.s32.totalorder %s19, 1
      %p50 = por %p48, %p49
      %p51 = scmp.ne.s32.totalorder %s43, %s46
      %p52 = scmp.eq.s32.totalorder %s19, 0
      %p53 = por %p51, %p52
      %p54 = scmp.ne.s32.totalorder %s43, %s46
      %p55 = scmp.eq.s32.totalorder %s24, 1
      %p56 = por %p54, %p55
      %p57 = scmp.ne.s32.totalorder %s46, %s47
      %p58 = scmp.eq.s32.totalorder %s24, 0
      %p59 = por %p57, %p58
      %p60 = scmp.ne.s32.totalorder %s46, %s47
      %p61 = scmp.eq.s32.totalorder %s25, 1
      %p62 = por %p60, %p61
      %p64 = scmp.ne.s32.totalorder %s47, %s63
      %p65 = scmp.eq.s32.totalorder %s25, 0
      %p66 = por %p64, %p65
      %s67 = ssub.s32 %s26, %s38
      %p68 = scmp.eq.s32.totalorder %s67, 0
      %s70 = sadd.s32 %s69, 1
      %s71 = scalar_select %p68, %s69, %s70
      %p74 = pneg %p68
      %p75 = scmp.eq.s32.totalorder %s19, 1
      %p76 = por %p74, %p75
      %p77 = scmp.ne.s32.totalorder %s69, %s72
      %p78 = scmp.eq.s32.totalorder %s19, 0
      %p79 = por %p77, %p78
      %p80 = scmp.ne.s32.totalorder %s69, %s72
      %p81 = scmp.eq.s32.totalorder %s24, 1
      %p82 = por %p80, %p81
      %p83 = scmp.ne.s32.totalorder %s72, %s73
      %p84 = scmp.eq.s32.totalorder %s24, 0
      %p85 = por %p83, %p84
      %p86 = scmp.ne.s32.totalorder %s72, %s73
      %p87 = scmp.eq.s32.totalorder %s25, 1
      %p88 = por %p86, %p87
      %p90 = scmp.ne.s32.totalorder %s73, %s89
      %p91 = scmp.eq.s32.totalorder %s25, 0
      %p92 = por %p90, %p91
      %s93 = ssub.s32 %s27, %s34
      %p94 = scmp.eq.s32.totalorder %s93, 0
      %s96 = sadd.s32 %s95, 1
      %s97 = scalar_select %p94, %s95, %s96
      %p100 = pneg %p94
      %p101 = scmp.eq.s32.totalorder %s19, 1
      %p102 = por %p100, %p101
      %p103 = scmp.ne.s32.totalorder %s95, %s98
      %p104 = scmp.eq.s32.totalorder %s19, 0
      %p105 = por %p103, %p104
      %p106 = scmp.ne.s32.totalorder %s95, %s98
      %p107 = scmp.eq.s32.totalorder %s24, 1
      %p108 = por %p106, %p107
      %p109 = scmp.ne.s32.totalorder %s98, %s99
      %p110 = scmp.eq.s32.totalorder %s24, 0
      %p111 = por %p109, %p110
      %p112 = scmp.ne.s32.totalorder %s98, %s99
      %p113 = scmp.eq.s32.totalorder %s25, 1
      %p114 = por %p112, %p113
      %p116 = scmp.ne.s32.totalorder %s99, %s115
      %p117 = scmp.eq.s32.totalorder %s25, 0
      %p118 = por %p116, %p117
      %s119 = ssub.s32 %s26, %s38
      %p120 = scmp.eq.s32.totalorder %s119, 0
      %s122 = sadd.s32 %s121, 1
      %s123 = scalar_select %p120, %s121, %s122
      %p126 = pneg %p120
      %p127 = scmp.eq.s32.totalorder %s19, 1
      %p128 = por %p126, %p127
      %p129 = scmp.ne.s32.totalorder %s121, %s124
      %p130 = scmp.eq.s32.totalorder %s19, 0
      %p131 = por %p129, %p130
      %p132 = scmp.ne.s32.totalorder %s121, %s124
      %p133 = scmp.eq.s32.totalorder %s24, 1
      %p134 = por %p132, %p133
      %p135 = scmp.ne.s32.totalorder %s124, %s125
      %p136 = scmp.eq.s32.totalorder %s24, 0
      %p137 = por %p135, %p136
      %p138 = scmp.ne.s32.totalorder %s124, %s125
      %p139 = scmp.eq.s32.totalorder %s25, 1
      %p140 = por %p138, %p139
      %p142 = scmp.ne.s32.totalorder %s125, %s141
      %p143 = scmp.eq.s32.totalorder %s25, 0
      %p144 = por %p142, %p143
      %s146 = sadd.s32 %s145, 1
      %p149 = scmp.eq.s32.totalorder %s19, 1
      %p150 = scmp.ne.s32.totalorder %s145, %s147
      %p151 = scmp.eq.s32.totalorder %s19, 0
      %p152 = por %p150, %p151
      %p153 = scmp.ne.s32.totalorder %s145, %s147
      %p154 = scmp.eq.s32.totalorder %s24, 1
      %p155 = por %p153, %p154
      %p156 = scmp.ne.s32.totalorder %s147, %s148
      %p157 = scmp.eq.s32.totalorder %s24, 0
      %p158 = por %p156, %p157
      %p159 = scmp.ne.s32.totalorder %s147, %s148
      %p160 = scmp.eq.s32.totalorder %s25, 1
      %p161 = por %p159, %p160
      %p163 = scmp.ne.s32.totalorder %s148, %s162
      %p164 = scmp.eq.s32.totalorder %s25, 0
      %p165 = por %p163, %p164
      %s167 = sadd.s32 %s166, 1
      %p170 = scmp.eq.s32.totalorder %s19, 1
      %p171 = scmp.ne.s32.totalorder %s166, %s168
      %p172 = scmp.eq.s32.totalorder %s19, 0
      %p173 = por %p171, %p172
      %p174 = scmp.ne.s32.totalorder %s166, %s168
      %p175 = scmp.eq.s32.totalorder %s24, 1
      %p176 = por %p174, %p175
      %p177 = scmp.ne.s32.totalorder %s168, %s169
      %p178 = scmp.eq.s32.totalorder %s24, 0
      %p179 = por %p177, %p178
      %p180 = scmp.ne.s32.totalorder %s168, %s169
      %p181 = scmp.eq.s32.totalorder %s25, 1
      %p182 = por %p180, %p181
      %p184 = scmp.ne.s32.totalorder %s169, %s183
      %p185 = scmp.eq.s32.totalorder %s25, 0
      %p186 = por %p184, %p185
      %s187 = ssub.s32 %s26, %s38
      %p188 = scmp.eq.s32.totalorder %s187, 0
      %s190 = sadd.s32 %s189, 1
      %s191 = scalar_select %p188, %s189, %s190
      %p194 = pneg %p188
      %p195 = scmp.eq.s32.totalorder %s19, 1
      %p196 = por %p194, %p195
      %p197 = scmp.ne.s32.totalorder %s189, %s192
      %p198 = scmp.eq.s32.totalorder %s19, 0
      %p199 = por %p197, %p198
      %p200 = scmp.ne.s32.totalorder %s189, %s192
      %p201 = scmp.eq.s32.totalorder %s24, 1
      %p202 = por %p200, %p201
      %p203 = scmp.ne.s32.totalorder %s192, %s193
      %p204 = scmp.eq.s32.totalorder %s24, 0
      %p205 = por %p203, %p204
      %p206 = scmp.ne.s32.totalorder %s192, %s193
      %p207 = scmp.eq.s32.totalorder %s25, 1
      %p208 = por %p206, %p207
      %p210 = scmp.ne.s32.totalorder %s193, %s209
      %p211 = scmp.eq.s32.totalorder %s25, 0
      %p212 = por %p210, %p211
      %p213 = scmp.le.s32.totalorder 1, %s19
      %p214 = scmp.lt.s32.totalorder %s19, 3
      %p215 = pnand %p213, %p214
      %p216 = pneg %p215
      // Predicated region
      $region9: #{tpu_custom_call.1} parent=5 // pred_check
        _
      $region10: #{tpu_custom_call.1} parent=5 // pred_check_branch
        %218 = sbr.rel (%p215) target = $region12
      $region11: #{tpu_custom_call.1} parent=5 // pred_region
        %s219 = ssub.s32 %s19, 1
        // Predicated region
        $region13: #{tpu_custom_call.1} parent=11 // pred_check
          %p220 = pneg %p111
        $region14: #{tpu_custom_call.1} parent=11 // pred_check_branch
          %222 = sbr.rel (%p220) target = $region16
        $region15: #{tpu_custom_call.1} parent=11 // pred_region
          %s223 = smul.u32 16, %s29
          %s225 = ssub.s32 2048, 2048
          %226 = vsyncadd [#allocation4], %s225
          %s227 = smul.addr %s223, 128
          %s228 = scalar_lea.hbm %s2, %s227
          %s229 = sshll.u32 [#allocation3], 4
          %s230 = int_to_ptr.vmem [resolvable:$true] %s229
          %235 = dma.hbm_to_vmem [thread:$0]  %s228, 2048, %s230, [#allocation4], 128, 128, 8
        $region16: #{tpu_custom_call.1} parent=11 // pred_fallthru
          _
        // Predicated region
        $region17: #{tpu_custom_call.1} parent=11 // pred_check
          %p236 = pneg %p158
        $region18: #{tpu_custom_call.1} parent=11 // pred_check_branch
          %238 = sbr.rel (%p236) target = $region20
        $region19: #{tpu_custom_call.1} parent=11 // pred_region
          %s240 = ssub.s32 2048, 2048
          %241 = vsyncadd [#allocation7], %s240
          %s242 = sshll.u32 [#allocation8], 4
          %s243 = int_to_ptr.vmem [resolvable:$true] %s242
          %248 = dma.hbm_to_vmem [thread:$0]  %s4, 2048, %s243, [#allocation7], 128, 128, 8
        $region20: #{tpu_custom_call.1} parent=11 // pred_fallthru
          _
        // Predicated region
        $region21: #{tpu_custom_call.1} parent=11 // pred_check
          %p249 = pneg %p179
        $region22: #{tpu_custom_call.1} parent=11 // pred_check_branch
          %251 = sbr.rel (%p249) target = $region24
        $region23: #{tpu_custom_call.1} parent=11 // pred_region
          _
        $region24: #{tpu_custom_call.1} parent=11 // pred_fallthru
          _
      $region12: #{tpu_custom_call.1} parent=5 // pred_fallthru
        _
      %p252 = scmp.lt.s32.totalorder %s19, 2
      // Predicated region
      $region25: #{tpu_custom_call.1} parent=5 // pred_check
        %p253 = pneg %p252
      $region26: #{tpu_custom_call.1} parent=5 // pred_check_branch
        %255 = sbr.rel (%p253) target = $region28
      $region27: #{tpu_custom_call.1} parent=5 // pred_region
        // Predicated region
        $region29: #{tpu_custom_call.1} parent=27 // pred_check
          %p256 = pneg %p53
        $region30: #{tpu_custom_call.1} parent=27 // pred_check_branch
          %258 = sbr.rel (%p256) target = $region32
        $region31: #{tpu_custom_call.1} parent=27 // pred_region
          %p259 = scmp.lt.s32.totalorder %s26, 1
          %s260 = scalar_select %p259, %s26, 1
          %p261 = scmp.lt.s32.totalorder %s27, 0
          %s262 = scalar_select %p261, %s27, 0
          %s263 = sadd.s32 %s262, %s260
          %s264 = smul.addr %s263, 8
          %s265 = scalar_lea.vmem %s0, %s264
        $region32: #{tpu_custom_call.1} parent=27 // pred_fallthru
          _
        // Predicated region
        $region33: #{tpu_custom_call.1} parent=27 // pred_check
          %p266 = pneg %p79
        $region34: #{tpu_custom_call.1} parent=27 // pred_check_branch
          %268 = sbr.rel (%p266) target = $region36
        $region35: #{tpu_custom_call.1} parent=27 // pred_region
          %p269 = scmp.lt.s32.totalorder %s26, 1
          %s270 = scalar_select %p269, %s26, 1
          %s271 = smul.addr %s270, 8
          %s272 = scalar_lea.vmem %s1, %s271
        $region36: #{tpu_custom_call.1} parent=27 // pred_fallthru
          _
        // Predicated region
        $region37: #{tpu_custom_call.1} parent=27 // pred_check
          %p273 = pneg %p131
        $region38: #{tpu_custom_call.1} parent=27 // pred_check_branch
          %275 = sbr.rel (%p273) target = $region40
        $region39: #{tpu_custom_call.1} parent=27 // pred_region
          %s276 = sand.u32 %s19, 1
          %s277 = scalar_lea.sflag [#allocation7], %s276
          %s278 = sand.u32 %s121, 1
          %s279 = smul.addr %s278, 8
          %s280 = scalar_lea.vmem [#allocation6], %s279
          %s282 = ssub.s32 128, 128
          %283 = vsyncadd %s277, %s282
          %s284 = smul.addr %s26, 128
          %s285 = scalar_lea.hbm %s3, %s284
          %s287 = sshll.u32 %s280, 4
          %s288 = int_to_ptr.vmem [resolvable:$true] %s287
          %290 = dma.hbm_to_vmem [thread:$0]  %s285, 128, %s288, %s277
        $region40: #{tpu_custom_call.1} parent=27 // pred_fallthru
          _
      $region28: #{tpu_custom_call.1} parent=5 // pred_fallthru
        _
      %p291 = scmp.le.s32.totalorder 1, %s19
      %p292 = scmp.lt.s32.totalorder %s19, 3
      %p293 = pnand %p291, %p292
      %p294 = pneg %p293
      // Predicated region
      $region41: #{tpu_custom_call.1} parent=5 // pred_check
        _
      $region42: #{tpu_custom_call.1} parent=5 // pred_check_branch
        %296 = sbr.rel (%p293) target = $region44
      $region43: #{tpu_custom_call.1} parent=5 // pred_region
        %s297 = ssub.s32 %s19, 1
        // Predicated region
        $region45: #{tpu_custom_call.1} parent=43 // pred_check
          %p298 = pneg %p111
        $region46: #{tpu_custom_call.1} parent=43 // pred_check_branch
          %300 = sbr.rel (%p298) target = $region48
        $region47: #{tpu_custom_call.1} parent=43 // pred_region
          %301 = dma.done [#allocation4], 2048
        $region48: #{tpu_custom_call.1} parent=43 // pred_fallthru
          _
        %s302 = sand.u32 %s24, 1
        %s303 = scalar_lea.sflag [#allocation7], %s302
        %s304 = sand.u32 %s124, 1
        %s305 = smul.addr %s304, 8
        %s306 = scalar_lea.vmem [#allocation6], %s305
        // Predicated region
        $region49: #{tpu_custom_call.1} parent=43 // pred_check
          %p307 = pneg %p137
        $region50: #{tpu_custom_call.1} parent=43 // pred_check_branch
          %309 = sbr.rel (%p307) target = $region52
        $region51: #{tpu_custom_call.1} parent=43 // pred_region
          %310 = dma.done %s303, 128
        $region52: #{tpu_custom_call.1} parent=43 // pred_fallthru
          _
        // Predicated region
        $region53: #{tpu_custom_call.1} parent=43 // pred_check
          %p311 = pneg %p158
        $region54: #{tpu_custom_call.1} parent=43 // pred_check_branch
          %313 = sbr.rel (%p311) target = $region56
        $region55: #{tpu_custom_call.1} parent=43 // pred_region
          %314 = dma.done [#allocation7], 2048
        $region56: #{tpu_custom_call.1} parent=43 // pred_fallthru
          _
        %p315 = scmp.lt.s32.totalorder %s28, 1
        %s316 = scalar_select %p315, %s28, 1
        %p317 = scmp.lt.s32.totalorder %s29, 0
        %s318 = scalar_select %p317, %s29, 0
        %s319 = sadd.s32 %s318, %s316
        %s320 = smul.addr %s319, 8
        %s321 = scalar_lea.vmem %s0, %s320
        %p322 = pneg %p59
        %p323 = pneg %p56
        %p324 = scmp.lt.s32.totalorder %s28, 1
        %s325 = scalar_select %p324, %s28, 1
        %s326 = smul.addr %s325, 8
        %s327 = scalar_lea.vmem %s1, %s326
        %p328 = pneg %p85
        %p329 = pneg %p82
        %p330 = pneg %p111
        %p331 = pneg %p108
        %s332 = sand.u32 %s24, 1
        %s333 = scalar_lea.sflag [#allocation7], %s332
        %s334 = sand.u32 %s124, 1
        %s335 = smul.addr %s334, 8
        %s336 = scalar_lea.vmem [#allocation6], %s335
        %p337 = pneg %p137
        %p338 = pneg %p134
        %p339 = pneg %p158
        %p340 = pneg %p155
        %p341 = pneg %p179
        %p342 = pneg %p176
        %p343 = pneg %p205
        %p344 = pneg %p202
        %s345 = sand.u32 %s192, 1
        %s346 = scalar_lea.sflag [#allocation5], %s345
        %s347 = sand.u32 %s192, 1
        %s348 = smul.addr %s347, 8
        %s349 = scalar_lea.vmem [#allocation9], %s348
        %p350 = scmp.lt.s32.totalorder %s28, 1
        %s351 = scalar_select %p350, %s28, 1
        %p352 = scmp.lt.s32.totalorder %s29, 0
        %s353 = scalar_select %p352, %s29, 0
        %s354 = sadd.s32 %s353, %s351
        %s355 = smul.addr %s354, 8
        %s356 = scalar_lea.vmem %s0, %s355
        %p357 = scmp.lt.s32.totalorder %s28, 1
        %s358 = scalar_select %p357, %s28, 1
        %s359 = smul.addr %s358, 8
        %s360 = scalar_lea.vmem %s1, %s359
        %s361 = smul.u32 16, %s29
        %p362 = scmp.eq.s32.totalorder %s29, 0
        // Predicated region
        $region57: #{tpu_custom_call.1} parent=43 // pred_check
          %p363 = pneg %p362
        $region58: #{tpu_custom_call.1} parent=43 // pred_check_branch
          %365 = sbr.rel (%p363) target = $region60
        $region59: #{tpu_custom_call.1} parent=43 // pred_region
          %366 = vst [vmem:[#allocation2] sm:$0xff] 0.0
        $region60: #{tpu_custom_call.1} parent=43 // pred_fallthru
          _
        %v367 = vld [vmem:[#allocation2] sm:$0xff]
        %v368 = vld [vmem:[%s356] sm:$0xff]
        %v369 = vld [vmem:[#allocation3] sm:$0xff]
        %v370 = vld [vmem:[#allocation3 + $0x8] sm:$0xff]
        %v371 = vld [vmem:[#allocation3 + $0x10] sm:$0xff]
        %v372 = vld [vmem:[#allocation3 + $0x18] sm:$0xff]
        %v373 = vld [vmem:[#allocation3 + $0x20] sm:$0xff]
        %v374 = vld [vmem:[#allocation3 + $0x28] sm:$0xff]
        %v375 = vld [vmem:[#allocation3 + $0x30] sm:$0xff]
        %v376 = vld [vmem:[#allocation3 + $0x38] sm:$0xff]
        %v377 = vld [vmem:[#allocation3 + $0x40] sm:$0xff]
        %v378 = vld [vmem:[#allocation3 + $0x48] sm:$0xff]
        %v379 = vld [vmem:[#allocation3 + $0x50] sm:$0xff]
        %v380 = vld [vmem:[#allocation3 + $0x58] sm:$0xff]
        %v381 = vld [vmem:[#allocation3 + $0x60] sm:$0xff]
        %v382 = vld [vmem:[#allocation3 + $0x68] sm:$0xff]
        %v383 = vld [vmem:[#allocation3 + $0x70] sm:$0xff]
        %v384 = vld [vmem:[#allocation3 + $0x78] sm:$0xff]
        %385 = vmatprep.subr.mxu0 0.0
        %386 = vmatpush1.msra.mxu0 %v369
        %387 = vmatprep.subr.mxu0 0.0
        %388 = vmatpush1.msra.mxu0 %v370
        %389 = vmatprep.subr.mxu0 0.0
        %390 = vmatpush1.msra.mxu0 %v371
        %391 = vmatprep.subr.mxu0 0.0
        %392 = vmatpush1.msra.mxu0 %v372
        %393 = vmatprep.subr.mxu0 0.0
        %394 = vmatpush1.msra.mxu0 %v373
        %395 = vmatprep.subr.mxu0 0.0
        %396 = vmatpush1.msra.mxu0 %v374
        %397 = vmatprep.subr.mxu0 0.0
        %398 = vmatpush1.msra.mxu0 %v375
        %399 = vmatprep.subr.mxu0 0.0
        %400 = vmatpush1.msra.mxu0 %v376
        %401 = vmatprep.subr.mxu0 0.0
        %402 = vmatpush1.msra.mxu0 %v377
        %403 = vmatprep.subr.mxu0 0.0
        %404 = vmatpush1.msra.mxu0 %v378
        %405 = vmatprep.subr.mxu0 0.0
        %406 = vmatpush1.msra.mxu0 %v379
        %407 = vmatprep.subr.mxu0 0.0
        %408 = vmatpush1.msra.mxu0 %v380
        %409 = vmatprep.subr.mxu0 0.0
        %410 = vmatpush1.msra.mxu0 %v381
        %411 = vmatprep.subr.mxu0 0.0
        %412 = vmatpush1.msra.mxu0 %v382
        %413 = vmatprep.subr.mxu0 0.0
        %414 = vmatpush1.msra.mxu0 %v383
        %415 = vmatprep.subr.mxu0 0.0
        %416 = vmatpush1.msra.mxu0 %v384
        %417 = vmatprep.subr.mxu0 0.0
        %418 = vmatpush1.msra.mxu0 0.0
        %419 = vmatprep.subr.mxu0 0.0
        %420 = vmatpush1.msra.mxu0 0.0
        %421 = vmatprep.subr.mxu0 0.0
        %422 = vmatpush1.msra.mxu0 0.0
        %423 = vmatprep.subr.mxu0 0.0
        %424 = vmatpush1.msra.mxu0 0.0
        %425 = vmatprep.subr.mxu0 0.0
        %426 = vmatpush1.msra.mxu0 0.0
        %427 = vmatprep.subr.mxu0 0.0
        %428 = vmatpush1.msra.mxu0 0.0
        %429 = vmatprep.subr.mxu0 0.0
        %430 = vmatpush1.msra.mxu0 0.0
        %431 = vmatprep.subr.mxu0 0.0
        %432 = vmatpush1.msra.mxu0 0.0
        %433 = vmatprep.subr.mxu0 0.0
        %434 = vmatpush1.msra.mxu0 0.0
        %435 = vmatprep.subr.mxu0 0.0
        %436 = vmatpush1.msra.mxu0 0.0
        %437 = vmatprep.subr.mxu0 0.0
        %438 = vmatpush1.msra.mxu0 0.0
        %439 = vmatprep.subr.mxu0 0.0
        %440 = vmatpush1.msra.mxu0 0.0
        %441 = vmatprep.subr.mxu0 0.0
        %442 = vmatpush1.msra.mxu0 0.0
        %443 = vmatprep.subr.mxu0 0.0
        %444 = vmatpush1.msra.mxu0 0.0
        %445 = vmatprep.subr.mxu0 0.0
        %446 = vmatpush1.msra.mxu0 0.0
        %447 = vmatprep.subr.mxu0 0.0
        %448 = vmatpush1.msra.mxu0 0.0
        %449 = vmatprep.mubr.f32.mxu0 0.0
        %450 = vmatmul.mubr.f32.gmra.mrb[0].mxu0 %v368
        %v451 = vpop.f32.mrb[0].mxu0
        %v452 = vadd.f32 0.0, %v451
        %v453 = vpop.f32.mrb[0].mxu0
        %454 = vdwg.mxu0
        %v455 = vadd.f32 %v367, %v452
        %456 = vst [vmem:[#allocation2] sm:$0xff] %v455
        // Predicated region
        $region61: #{tpu_custom_call.1} parent=43 // pred_check
          %p457 = pneg %p362
        $region62: #{tpu_custom_call.1} parent=43 // pred_check_branch
          %459 = sbr.rel (%p457) target = $region64
        $region63: #{tpu_custom_call.1} parent=43 // pred_region
          %v460 = vld [vmem:[%s360] sm:$0xff]
          %v461 = vld [vmem:[#allocation2] sm:$0xff]
          %463 = vset.pattern.permute.xlu0 0
          %464 = vperm.xlu0 %463, %v460
          %v465 = vpop.permute.xlu0 %464
          %v467 = vmul.f32 %v465, %v461
          %v468 = vmul.f32 %v460, %v460
          %v469 = vld [vmem:[%s306] sm:$0xff]
          %471 = vset.pattern.permute.xlu0 0
          %472 = vperm.xlu0 %471, %v468
          %v473 = vpop.permute.xlu0 %472
          %v475 = vmul.f32 %v473, %v469
          %v476 = vadd.f32 %v467, %v475
          %v477 = vld [vmem:[#allocation8] sm:$0xff]
          %v478 = vld [vmem:[#allocation8 + $0x8] sm:$0xff]
          %v479 = vld [vmem:[#allocation8 + $0x10] sm:$0xff]
          %v480 = vld [vmem:[#allocation8 + $0x18] sm:$0xff]
          %v481 = vld [vmem:[#allocation8 + $0x20] sm:$0xff]
          %v482 = vld [vmem:[#allocation8 + $0x28] sm:$0xff]
          %v483 = vld [vmem:[#allocation8 + $0x30] sm:$0xff]
          %v484 = vld [vmem:[#allocation8 + $0x38] sm:$0xff]
          %v485 = vld [vmem:[#allocation8 + $0x40] sm:$0xff]
          %v486 = vld [vmem:[#allocation8 + $0x48] sm:$0xff]
          %v487 = vld [vmem:[#allocation8 + $0x50] sm:$0xff]
          %v488 = vld [vmem:[#allocation8 + $0x58] sm:$0xff]
          %v489 = vld [vmem:[#allocation8 + $0x60] sm:$0xff]
          %v490 = vld [vmem:[#allocation8 + $0x68] sm:$0xff]
          %v491 = vld [vmem:[#allocation8 + $0x70] sm:$0xff]
          %v492 = vld [vmem:[#allocation8 + $0x78] sm:$0xff]
          %v493 = vld [vmem:[%s5] sm:$0x1]
          %v495 = vlaneseq
          %v496 = vshrl.u32 %v495, 7
          %v497 = vsub.s32 0, %v496
          %v498 = vrot.slane %v493, %v497
          %500 = vmatprep.subr.mxu0 0.0
          %501 = vmatpush1.msra.mxu0 %v477
          %502 = vmatprep.subr.mxu0 0.0
          %503 = vmatpush1.msra.mxu0 %v478
          %504 = vmatprep.subr.mxu0 0.0
          %505 = vmatpush1.msra.mxu0 %v479
          %506 = vmatprep.subr.mxu0 0.0
          %507 = vmatpush1.msra.mxu0 %v480
          %508 = vmatprep.subr.mxu0 0.0
          %509 = vmatpush1.msra.mxu0 %v481
          %510 = vmatprep.subr.mxu0 0.0
          %511 = vmatpush1.msra.mxu0 %v482
          %512 = vmatprep.subr.mxu0 0.0
          %513 = vmatpush1.msra.mxu0 %v483
          %514 = vmatprep.subr.mxu0 0.0
          %515 = vmatpush1.msra.mxu0 %v484
          %516 = vmatprep.subr.mxu0 0.0
          %517 = vmatpush1.msra.mxu0 %v485
          %518 = vmatprep.subr.mxu0 0.0
          %519 = vmatpush1.msra.mxu0 %v486
          %520 = vmatprep.subr.mxu0 0.0
          %521 = vmatpush1.msra.mxu0 %v487
          %522 = vmatprep.subr.mxu0 0.0
          %523 = vmatpush1.msra.mxu0 %v488
          %524 = vmatprep.subr.mxu0 0.0
          %525 = vmatpush1.msra.mxu0 %v489
          %526 = vmatprep.subr.mxu0 0.0
          %527 = vmatpush1.msra.mxu0 %v490
          %528 = vmatprep.subr.mxu0 0.0
          %529 = vmatpush1.msra.mxu0 %v491
          %530 = vmatprep.subr.mxu0 0.0
          %531 = vmatpush1.msra.mxu0 %v492
          %532 = vmatprep.subr.mxu0 0.0
          %533 = vmatpush1.msra.mxu0 0.0
          %534 = vmatprep.subr.mxu0 0.0
          %535 = vmatpush1.msra.mxu0 0.0
          %536 = vmatprep.subr.mxu0 0.0
          %537 = vmatpush1.msra.mxu0 0.0
          %538 = vmatprep.subr.mxu0 0.0
          %539 = vmatpush1.msra.mxu0 0.0
          %540 = vmatprep.subr.mxu0 0.0
          %541 = vmatpush1.msra.mxu0 0.0
          %542 = vmatprep.subr.mxu0 0.0
          %543 = vmatpush1.msra.mxu0 0.0
          %544 = vmatprep.subr.mxu0 0.0
          %545 = vmatpush1.msra.mxu0 0.0
          %546 = vmatprep.subr.mxu0 0.0
          %547 = vmatpush1.msra.mxu0 0.0
          %548 = vmatprep.subr.mxu0 0.0
          %549 = vmatpush1.msra.mxu0 0.0
          %550 = vmatprep.subr.mxu0 0.0
          %551 = vmatpush1.msra.mxu0 0.0
          %552 = vmatprep.subr.mxu0 0.0
          %553 = vmatpush1.msra.mxu0 0.0
          %554 = vmatprep.subr.mxu0 0.0
          %555 = vmatpush1.msra.mxu0 0.0
          %556 = vmatprep.subr.mxu0 0.0
          %557 = vmatpush1.msra.mxu0 0.0
          %558 = vmatprep.subr.mxu0 0.0
          %559 = vmatpush1.msra.mxu0 0.0
          %560 = vmatprep.subr.mxu0 0.0
          %561 = vmatpush1.msra.mxu0 0.0
          %562 = vmatprep.subr.mxu0 0.0
          %563 = vmatpush1.msra.mxu0 0.0
          %564 = vmatprep.mubr.f32.mxu0 0.0
          %565 = vmatmul.mubr.f32.gmra.mrb[0].mxu0 %v476
          %v566 = vpop.f32.mrb[0].mxu0
          %v567 = vadd.f32 %v498, %v566
          %v568 = vpop.f32.mrb[0].mxu0
          %569 = vdwg.mxu0
          %570 = vst [vmem:[%s349] sm:$0xff] %v567
        $region64: #{tpu_custom_call.1} parent=43 // pred_fallthru
          _
        %s571 = sand.u32 %s192, 1
        %s572 = scalar_lea.sflag [#allocation5], %s571
        %s573 = sand.u32 %s192, 1
        %s574 = smul.addr %s573, 8
        %s575 = scalar_lea.vmem [#allocation9], %s574
        // Predicated region
        $region65: #{tpu_custom_call.1} parent=43 // pred_check
          %p576 = pneg %p202
        $region66: #{tpu_custom_call.1} parent=43 // pred_check_branch
          %578 = sbr.rel (%p576) target = $region68
        $region67: #{tpu_custom_call.1} parent=43 // pred_region
          %s580 = ssub.s32 128, 128
          %581 = vsyncadd %s572, %s580
          %s582 = smul.addr %s28, 128
          %s583 = scalar_lea.hbm %s6, %s582
          %s585 = sshll.u32 %s575, 4
          %s586 = int_to_ptr.vmem [resolvable:$true] %s585
          %588 = dma.vmem_to_hbm [thread:$0]  %s586, 128, %s583, %s572
        $region68: #{tpu_custom_call.1} parent=43 // pred_fallthru
          _
      $region44: #{tpu_custom_call.1} parent=5 // pred_fallthru
        _
      %p589 = scmp.le.s32.totalorder 2, %s19
      // Predicated region
      $region69: #{tpu_custom_call.1} parent=5 // pred_check
        %p590 = pneg %p589
      $region70: #{tpu_custom_call.1} parent=5 // pred_check_branch
        %592 = sbr.rel (%p590) target = $region72
      $region71: #{tpu_custom_call.1} parent=5 // pred_region
        %s593 = ssub.s32 %s19, 2
        // Predicated region
        $region73: #{tpu_custom_call.1} parent=71 // pred_check
          %p594 = pneg %p208
        $region74: #{tpu_custom_call.1} parent=71 // pred_check_branch
          %596 = sbr.rel (%p594) target = $region76
        $region75: #{tpu_custom_call.1} parent=71 // pred_region
          %s597 = sand.u32 %s193, 1
          %s598 = scalar_lea.sflag [#allocation5], %s597
          %s599 = sand.u32 %s193, 1
          %s600 = smul.addr %s599, 8
          %s601 = scalar_lea.vmem [#allocation9], %s600
          %602 = dma.done %s598, 128
        $region76: #{tpu_custom_call.1} parent=71 // pred_fallthru
          _
      $region72: #{tpu_custom_call.1} parent=5 // pred_fallthru
        _
    $region6: #{tpu_custom_call.1} parent=1 // loop_footer
      %s23 = sadd.s32 1, %s19
    $region7: #{tpu_custom_call.1} parent=1 // loop_footer_branch
      %18 = sbr.rel target = $region3
    $region8: #{tpu_custom_call.1} parent=1 // loop_exit
      _
    %603 = vsyncpa [#allocation4], 1
    %s604 = scalar_lea.sflag [#allocation4], 1
    %605 = vsyncpa %s604, 1
    %606 = vsyncpa [#allocation7], 1
    %s607 = scalar_lea.sflag [#allocation7], 1
    %608 = vsyncpa %s607, 1
    %609 = vsyncpa [#allocation5], 1
    %s610 = scalar_lea.sflag [#allocation5], 1
    %611 = vsyncpa %s610, 1

</llo_original>
